<compile_context>
chip_gen: v5e
topology: v5e:2x2
jax: 0.10.0
libtpu: 0.0.40
codegen_flags: <defaults>
</compile_context>

<pallas_src>
import jax
import jax.numpy as jnp
from jax.experimental import pallas as pl
from jax.experimental.pallas import tpu as pltpu


def _msenc_kernel(x_ref, w1_ref, b1_ref, w3_ref, b3_ref, o_ref):
    # x_ref : (TB, D_in)   VMEM   one batch tile (compute_dtype)
    # w1_ref: (D_in, H)    VMEM   fc1 weight, transposed, resident (constant index_map)
    # b1_ref: (1, H)       VMEM   f32
    # w3_ref: (H, OUT)     VMEM   fc3 weight (with 1x1-conv affine folded in), transposed
    # b3_ref: (1, OUT)     VMEM   f32 (with 1x1-conv bias folded in)
    # o_ref : (TB, OUT)    VMEM
    x = x_ref[...]
    # fc1 on the MXU, f32 accumulation.
    h = jnp.dot(x, w1_ref[...], preferred_element_type=jnp.float32) + b1_ref[...]
    # SiLU: exp on the EUP, approximate reciprocal also on the EUP (divide off the VALU).
    e = jnp.exp(-h)
    h = h * pl.reciprocal(1.0 + e, approx=True)
    # 1x1 Conv2d scalar affine is folded into (w3_ref, b3_ref) in the wrapper (exact).
    # TODO(synk): AdaptiveAvgPool2d((1,1)) omitted (see header) so fc3's 128 inputs exist.
    y = jnp.dot(h.astype(w3_ref.dtype), w3_ref[...], preferred_element_type=jnp.float32)
    o_ref[...] = (y + b3_ref[...]).astype(o_ref.dtype)


def _round_up(v, m):
    return ((v + m - 1) // m) * m


def multi_signal_encoder(x, fc1_w, fc1_b, conv_w, conv_b, fc3_w, fc3_b,
                         *, compute_dtype=jnp.float32, block_b=None):
    """Equivalent of MultiSignalEncoder.forward (with the fixes noted in the header).

    Args:
      x:      (batch, n_input_frames*frame_step, input_size); flattened per batch row
              exactly like x.view(batch, -1)
      fc1_w:  (128, n_input_frames*frame_step*input_size)
      fc1_b:  (128,)
      conv_w: (1, 1, 1, 1)   nn.Conv2d(1, 1, kernel_size=1) weight
      conv_b: (1,)
      fc3_w:  (output_size, 128)
      fc3_b:  (output_size,)
      compute_dtype: matmul input dtype (f32 default; bf16 for v7x MXU / DMA savings).

    Returns:
      (batch, output_size) float32
    """
    B = x.shape[0]
    x2 = x.reshape(B, -1)                                 # x.view(batch, -1)
    d_in = x2.shape[1]
    hidden = fc1_w.shape[0]                               # 128
    out_f = fc3_w.shape[0]

    cw = jnp.asarray(conv_w, jnp.float32).reshape(())
    cb = jnp.asarray(conv_b, jnp.float32).reshape(())

    w1t = jnp.asarray(fc1_w, jnp.float32).T               # (d_in, hidden), lane-dense
    b1r = jnp.asarray(fc1_b, jnp.float32).reshape(1, hidden)
    w3t = jnp.asarray(fc3_w, jnp.float32).T               # (hidden, out_f), lane-dense
    # Fold the post-SiLU scalar affine (h*cw + cb) into fc3 (mathematically exact):
    #   (h*cw + cb) @ W3t + b3  ==  h @ (cw*W3t) + (b3 + cb * sum_k W3t[k, :])
    w3_eff = cw * w3t
    b3_eff = (jnp.asarray(fc3_b, jnp.float32) + cb * jnp.sum(w3t, axis=0)).reshape(1, out_f)

    x2 = x2.astype(compute_dtype)
    w1t = w1t.astype(compute_dtype)
    w3_eff = w3_eff.astype(compute_dtype)

    itm = jnp.dtype(compute_dtype).itemsize

    # ---- batch tile sized from a VMEM budget (safe on v5e/v6e/v7x) ------------------
    # Double-buffered x tiles + double-buffered f32 output tiles + (conservatively
    # double-buffered) resident weights/biases must fit the budget.
    VMEM_BUDGET = 32 << 20
    fixed_bytes = 2 * (d_in * hidden * itm + hidden * 4 + hidden * out_f * itm + out_f * 4)
    per_row_bytes = 2 * d_in * itm + 2 * out_f * 4
    if block_b is not None:
        tb = int(block_b)
    else:
        tb_cap = max(8, (VMEM_BUDGET - fixed_bytes) // per_row_bytes)
        tb = int(min(2048, tb_cap, _round_up(B, 8)))
        tb = max(8, (tb // 8) * 8)                         # sublane-dense batch tile

    # Pad the batch to a multiple of the tile (zeros); never fall back to a single
    # huge ragged block.
    b_pad = _round_up(B, tb)
    if b_pad != B:
        x2 = jnp.pad(x2, ((0, b_pad - B), (0, 0)))

    vmem_limit = int(min(max(fixed_bytes + per_row_bytes * tb + (8 << 20), 32 << 20),
                         48 << 20))

    grid = (b_pad // tb,)

    out = pl.pallas_call(
        _msenc_kernel,
        out_shape=jax.ShapeDtypeStruct((b_pad, out_f), jnp.float32),
        grid_spec=pltpu.PrefetchScalarGridSpec(
            num_scalar_prefetch=0,
            grid=grid,
            in_specs=[
                pl.BlockSpec((tb, d_in), lambda i: (i, 0)),           # x batch tile
                pl.BlockSpec((d_in, hidden), lambda i: (0, 0)),       # fc1 weight (resident)
                pl.BlockSpec((1, hidden), lambda i: (0, 0)),          # fc1 bias
                pl.BlockSpec((hidden, out_f), lambda i: (0, 0)),      # fc3 weight (resident)
                pl.BlockSpec((1, out_f), lambda i: (0, 0)),           # fc3 bias (+conv fold)
            ],
            out_specs=pl.BlockSpec((tb, out_f), lambda i: (i, 0)),
        ),
        compiler_params=pltpu.CompilerParams(
            dimension_semantics=("parallel",),
            vmem_limit_bytes=vmem_limit,
        ),
    )(x2, w1t, b1r, w3_eff, b3_eff)

    return out[:B] if b_pad != B else out


if __name__ == "__main__":
    key = jax.random.PRNGKey(0)
    ks = jax.random.split(key, 7)

    batch = 10                       # deliberately NOT a multiple of 8: exercises padding
    input_size = 32
    n_input_frames = 4
    frame_step = 2
    hidden = 128                     # fixed by the module (fc1 out / fc3 in)
    output_size = 128
    d_in = n_input_frames * frame_step * input_size      # 256

    x = jax.random.normal(ks[0], (batch, n_input_frames * frame_step, input_size),
                          dtype=jnp.float32)
    fc1_w = jax.random.normal(ks[1], (hidden, d_in), dtype=jnp.float32) * 0.05
    fc1_b = jax.random.normal(ks[2], (hidden,), dtype=jnp.float32) * 0.05
    conv_w = jax.random.normal(ks[3], (1, 1, 1, 1), dtype=jnp.float32) * 0.5
    conv_b = jax.random.normal(ks[4], (1,), dtype=jnp.float32) * 0.5
    fc3_w = jax.random.normal(ks[5], (output_size, hidden), dtype=jnp.float32) * 0.05
    fc3_b = jax.random.normal(ks[6], (output_size,), dtype=jnp.float32) * 0.05

    out = multi_signal_encoder(x, fc1_w, fc1_b, conv_w, conv_b, fc3_w, fc3_b)
    out = jax.block_until_ready(out)

    # Pure-JAX reference of the same math (exact sigmoid; kernel uses the EUP
    # approximate reciprocal, hence the slightly loosened tolerance).
    x2 = x.reshape(batch, -1)
    h = x2 @ fc1_w.T + fc1_b
    h = h * (1.0 / (1.0 + jnp.exp(-h)))                   # SiLU
    h = h * conv_w.reshape(()) + conv_b.reshape(())       # 1x1 conv scalar affine
    ref = h @ fc3_w.T + fc3_b

    assert out.shape == (batch, output_size)
    assert jnp.allclose(out, ref, atol=2e-2, rtol=2e-2)

    print("KERNEL_OK")
</pallas_src>

<mosaic_0001>
module attributes {stable_mosaic.version = 11 : i64} {
  func.func @_msenc_kernel(%arg0: i32, %arg1: memref<16x256xf32, #tpu.memory_space<vmem>>, %arg2: memref<256x128xf32, #tpu.memory_space<vmem>>, %arg3: memref<1x128xf32, #tpu.memory_space<vmem>>, %arg4: memref<128x128xf32, #tpu.memory_space<vmem>>, %arg5: memref<1x128xf32, #tpu.memory_space<vmem>>, %arg6: memref<16x128xf32, #tpu.memory_space<vmem>>) attributes {dimension_semantics = [#tpu.dimension_semantics<parallel>], iteration_bounds = array<i64: 1>, scalar_prefetch = 0 : i64, scratch_operands = 0 : i64, tpu.core_type = #tpu.core_type<tc>, window_params = [{transform_indices = @transform_0, window_bounds = array<i64: 16, 256>}, {pipeline_mode = #tpu.pipeline_mode<synchronous>, transform_indices = @transform_1, window_bounds = array<i64: 256, 128>}, {pipeline_mode = #tpu.pipeline_mode<synchronous>, transform_indices = @transform_2, window_bounds = array<i64: 1, 128>}, {pipeline_mode = #tpu.pipeline_mode<synchronous>, transform_indices = @transform_3, window_bounds = array<i64: 128, 128>}, {pipeline_mode = #tpu.pipeline_mode<synchronous>, transform_indices = @transform_4, window_bounds = array<i64: 1, 128>}, {transform_indices = @transform_5, window_bounds = array<i64: 16, 128>}]} {
    %c0 = arith.constant 0 : index
    %c0_0 = arith.constant 0 : index
    %0 = vector.load %arg1[%c0, %c0_0] : memref<16x256xf32, #tpu.memory_space<vmem>>, vector<16x256xf32>
    %c0_1 = arith.constant 0 : index
    %c0_2 = arith.constant 0 : index
    %1 = vector.load %arg2[%c0_1, %c0_2] : memref<256x128xf32, #tpu.memory_space<vmem>>, vector<256x128xf32>
    %cst = arith.constant dense<0.000000e+00> : vector<16x128xf32>
    %2 = tpu.matmul %0, %1, %cst {dimension_numbers = #tpu.dot_dimension_numbers<[1], [0], [0], [1], [0, 0, 1, 1], [], []>} : vector<16x256xf32>, vector<256x128xf32>, vector<16x128xf32> -> vector<16x128xf32>
    %c0_3 = arith.constant 0 : index
    %c0_4 = arith.constant 0 : index
    %3 = vector.load %arg3[%c0_3, %c0_4] : memref<1x128xf32, #tpu.memory_space<vmem>>, vector<1x128xf32>
    %4 = vector.broadcast %3 : vector<1x128xf32> to vector<16x128xf32>
    %5 = arith.addf %2, %4 : vector<16x128xf32>
    %cst_5 = arith.constant 0.000000e+00 : f32
    %6 = vector.broadcast %cst_5 : f32 to vector<16x128xf32>
    %7 = arith.subf %6, %5 : vector<16x128xf32>
    %8 = math.exp %7 : vector<16x128xf32>
    %cst_6 = arith.constant 1.000000e+00 : f32
    %9 = vector.broadcast %cst_6 : f32 to vector<16x128xf32>
    %10 = arith.addf %9, %8 : vector<16x128xf32>
    %11 = tpu.reciprocal %10 {approx = true} : vector<16x128xf32> -> vector<16x128xf32>
    %12 = arith.mulf %5, %11 : vector<16x128xf32>
    %c0_7 = arith.constant 0 : index
    %c0_8 = arith.constant 0 : index
    %13 = vector.load %arg4[%c0_7, %c0_8] : memref<128x128xf32, #tpu.memory_space<vmem>>, vector<128x128xf32>
    %cst_9 = arith.constant dense<0.000000e+00> : vector<16x128xf32>
    %14 = tpu.matmul %12, %13, %cst_9 {dimension_numbers = #tpu.dot_dimension_numbers<[1], [0], [0], [1], [0, 0, 1, 1], [], []>} : vector<16x128xf32>, vector<128x128xf32>, vector<16x128xf32> -> vector<16x128xf32>
    %c0_10 = arith.constant 0 : index
    %c0_11 = arith.constant 0 : index
    %15 = vector.load %arg5[%c0_10, %c0_11] : memref<1x128xf32, #tpu.memory_space<vmem>>, vector<1x128xf32>
    %16 = vector.broadcast %15 : vector<1x128xf32> to vector<16x128xf32>
    %17 = arith.addf %14, %16 : vector<16x128xf32>
    %c0_12 = arith.constant 0 : index
    %c0_13 = arith.constant 0 : index
    %18 = vector.load %arg6[%c0_12, %c0_13] : memref<16x128xf32, #tpu.memory_space<vmem>>, vector<16x128xf32>
    tpu.vector_store %arg6[%c0_12, %c0_13], %17 {strides = array<i32>} : memref<16x128xf32, #tpu.memory_space<vmem>>, vector<16x128xf32>,
    return
  }
  func.func @transform_0(%arg0: i32) -> (i32, i32) {
    %c0_i32 = arith.constant 0 : i32
    %c0_i32_0 = arith.constant 0 : i32
    return %arg0, %c0_i32 : i32, i32
  }
  func.func @transform_1(%arg0: i32) -> (i32, i32) {
    %c0_i32 = arith.constant 0 : i32
    %c0_i32_0 = arith.constant 0 : i32
    %c0_i32_1 = arith.constant 0 : i32
    return %c0_i32, %c0_i32_0 : i32, i32
  }
  func.func @transform_2(%arg0: i32) -> (i32, i32) {
    %c0_i32 = arith.constant 0 : i32
    %c0_i32_0 = arith.constant 0 : i32
    %c0_i32_1 = arith.constant 0 : i32
    return %c0_i32, %c0_i32_0 : i32, i32
  }
  func.func @transform_3(%arg0: i32) -> (i32, i32) {
    %c0_i32 = arith.constant 0 : i32
    %c0_i32_0 = arith.constant 0 : i32
    %c0_i32_1 = arith.constant 0 : i32
    return %c0_i32, %c0_i32_0 : i32, i32
  }
  func.func @transform_4(%arg0: i32) -> (i32, i32) {
    %c0_i32 = arith.constant 0 : i32
    %c0_i32_0 = arith.constant 0 : i32
    %c0_i32_1 = arith.constant 0 : i32
    return %c0_i32, %c0_i32_0 : i32, i32
  }
  func.func @transform_5(%arg0: i32) -> (i32, i32) {
    %c0_i32 = arith.constant 0 : i32
    %c0_i32_0 = arith.constant 0 : i32
    return %arg0, %c0_i32 : i32, i32
  }
}

</mosaic_0001>

<llo_original>
// kernel: tpu_custom_call.1
$region0: #{tpu_custom_call.1}
  #allocation0 [shape = 'u32[]', space=smem, size = 0x4, offset = 0x4, fixed_abs, tag = 'smem constant byte address 0x4 - core index']
  #allocation1 [shape = 'u32[72,128]{1,0:T(1,128)}', space=vmem, size = 0x9000, scoped, tag = 'internal scratch']
  %s0 = inlined_call_operand.hbm [shape: f32[16,256], index: 0, kind: input, shape index: {}]
  %s1 = inlined_call_operand.hbm [shape: f32[256,128], index: 1, kind: input, shape index: {}]
  %s2 = inlined_call_operand.vmem [shape: f32[1,128], index: 2, kind: input, shape index: {}]
  %s3 = inlined_call_operand.hbm [shape: f32[128,128], index: 3, kind: input, shape index: {}]
  %s4 = inlined_call_operand.vmem [shape: f32[1,128], index: 4, kind: input, shape index: {}]
  %s5 = inlined_call_operand.hbm [shape: f32[16,128], index: 5, kind: output, shape index: {}]
  %s6 = sld [smem:[#allocation0]]
  $region42: #{tpu_custom_call.1} parent=0
    _
  %s8 = ssub.s32 1, %s6
  %s9 = scalar_select 0, %s8, %s6
  $region1: #{tpu_custom_call.1} parent=0
    #allocation2 [shape = 'u8[16384]{0}', space=vmem, size = 0x4000, scoped, tag = 'input window, operand 0, single buffered']
    #allocation3 [shape = 's32[1]{0}', space=sflag, size = 0x4, scoped, tag = 'scoped memory for tpu_custom_call.1']
    #allocation4 [shape = 's32[1]{0}', space=sflag, size = 0x4, scoped, tag = 'scoped memory for tpu_custom_call.1']
    #allocation5 [shape = 'u8[131072]{0}', space=vmem, size = 0x20000, scoped, tag = 'input window, operand 1, single buffered']
    #allocation6 [shape = 's32[1]{0}', space=sflag, size = 0x4, scoped, tag = 'scoped memory for tpu_custom_call.1']
    #allocation7 [shape = 'u8[65536]{0}', space=vmem, size = 0x10000, scoped, tag = 'input window, operand 3, single buffered']
    #allocation8 [shape = 'u8[8192]{0}', space=vmem, size = 0x2000, scoped, tag = 'output window, operand 0, single buffered']
    %10 = vsyncpa [#allocation3], 0
    %11 = vsyncpa [#allocation6], 0
    %12 = vsyncpa [#allocation4], 0
    // Predicated region
    $region2: #{tpu_custom_call.1} parent=1 // pred_check
      _
    $region3: #{tpu_custom_call.1} parent=1 // pred_check_branch
      %14 = sbr.rel (0) target = $region5
    $region4: #{tpu_custom_call.1} parent=1 // pred_region
      %16 = vsyncadd [#allocation3], 0
      %s17 = sshll.u32 %s0, 4
      %s18 = int_to_ptr.hbm [resolvable:$true] %s17
      %s19 = sshll.u32 [#allocation2], 4
      %s20 = int_to_ptr.vmem [resolvable:$true] %s19
      %25 = dma.hbm_to_vmem [thread:$0]  %s18, 512, %s20, [#allocation3], 256, 256, 16
    $region5: #{tpu_custom_call.1} parent=1 // pred_fallthru
      _
    // Predicated region
    $region6: #{tpu_custom_call.1} parent=1 // pred_check
      _
    $region7: #{tpu_custom_call.1} parent=1 // pred_check_branch
      %27 = sbr.rel (0) target = $region9
    $region8: #{tpu_custom_call.1} parent=1 // pred_region
      %29 = vsyncadd [#allocation6], 0
      %s30 = sshll.u32 %s1, 4
      %s31 = int_to_ptr.hbm [resolvable:$true] %s30
      %s32 = sshll.u32 [#allocation5], 4
      %s33 = int_to_ptr.vmem [resolvable:$true] %s32
      %38 = dma.hbm_to_vmem [thread:$0]  %s31, 4096, %s33, [#allocation6], 128, 128, 8
    $region9: #{tpu_custom_call.1} parent=1 // pred_fallthru
      _
    // Predicated region
    $region10: #{tpu_custom_call.1} parent=1 // pred_check
      _
    $region11: #{tpu_custom_call.1} parent=1 // pred_check_branch
      %40 = sbr.rel (0) target = $region13
    $region12: #{tpu_custom_call.1} parent=1 // pred_region
      _
    $region13: #{tpu_custom_call.1} parent=1 // pred_fallthru
      _
    // Predicated region
    $region14: #{tpu_custom_call.1} parent=1 // pred_check
      _
    $region15: #{tpu_custom_call.1} parent=1 // pred_check_branch
      %42 = sbr.rel (0) target = $region17
    $region16: #{tpu_custom_call.1} parent=1 // pred_region
      %44 = vsyncadd [#allocation6], 0
      %s45 = sshll.u32 %s3, 4
      %s46 = int_to_ptr.hbm [resolvable:$true] %s45
      %s47 = sshll.u32 [#allocation7], 4
      %s48 = int_to_ptr.vmem [resolvable:$true] %s47
      %53 = dma.hbm_to_vmem [thread:$0]  %s46, 2048, %s48, [#allocation6], 128, 128, 8
    $region17: #{tpu_custom_call.1} parent=1 // pred_fallthru
      _
    // Predicated region
    $region18: #{tpu_custom_call.1} parent=1 // pred_check
      _
    $region19: #{tpu_custom_call.1} parent=1 // pred_check_branch
      %55 = sbr.rel (0) target = $region21
    $region20: #{tpu_custom_call.1} parent=1 // pred_region
      _
    $region21: #{tpu_custom_call.1} parent=1 // pred_fallthru
      _
    // Predicated region
    $region22: #{tpu_custom_call.1} parent=1 // pred_check
      _
    $region23: #{tpu_custom_call.1} parent=1 // pred_check_branch
      %57 = sbr.rel (0) target = $region25
    $region24: #{tpu_custom_call.1} parent=1 // pred_region
      %59 = dma.done [#allocation3], 512
    $region25: #{tpu_custom_call.1} parent=1 // pred_fallthru
      _
    // Predicated region
    $region26: #{tpu_custom_call.1} parent=1 // pred_check
      _
    $region27: #{tpu_custom_call.1} parent=1 // pred_check_branch
      %61 = sbr.rel (0) target = $region29
    $region28: #{tpu_custom_call.1} parent=1 // pred_region
      %63 = dma.done [#allocation6], 4096
    $region29: #{tpu_custom_call.1} parent=1 // pred_fallthru
      _
    // Predicated region
    $region30: #{tpu_custom_call.1} parent=1 // pred_check
      _
    $region31: #{tpu_custom_call.1} parent=1 // pred_check_branch
      %65 = sbr.rel (0) target = $region33
    $region32: #{tpu_custom_call.1} parent=1 // pred_region
      %67 = dma.done [#allocation6], 2048
    $region33: #{tpu_custom_call.1} parent=1 // pred_fallthru
      _
    %v68 = vld [vmem:[#allocation2] sm:$0xff]
    %v69 = vld [vmem:[#allocation2 + $0x8] sm:$0xff]
    %v70 = vld [vmem:[#allocation2 + $0x10] sm:$0xff]
    %v71 = vld [vmem:[#allocation2 + $0x18] sm:$0xff]
    %v72 = vld [vmem:[#allocation5] sm:$0xff]
    %v73 = vld [vmem:[#allocation5 + $0x8] sm:$0xff]
    %v74 = vld [vmem:[#allocation5 + $0x10] sm:$0xff]
    %v75 = vld [vmem:[#allocation5 + $0x18] sm:$0xff]
    %v76 = vld [vmem:[#allocation5 + $0x20] sm:$0xff]
    %v77 = vld [vmem:[#allocation5 + $0x28] sm:$0xff]
    %v78 = vld [vmem:[#allocation5 + $0x30] sm:$0xff]
    %v79 = vld [vmem:[#allocation5 + $0x38] sm:$0xff]
    %v80 = vld [vmem:[#allocation5 + $0x40] sm:$0xff]
    %v81 = vld [vmem:[#allocation5 + $0x48] sm:$0xff]
    %v82 = vld [vmem:[#allocation5 + $0x50] sm:$0xff]
    %v83 = vld [vmem:[#allocation5 + $0x58] sm:$0xff]
    %v84 = vld [vmem:[#allocation5 + $0x60] sm:$0xff]
    %v85 = vld [vmem:[#allocation5 + $0x68] sm:$0xff]
    %v86 = vld [vmem:[#allocation5 + $0x70] sm:$0xff]
    %v87 = vld [vmem:[#allocation5 + $0x78] sm:$0xff]
    %v88 = vld [vmem:[#allocation5 + $0x80] sm:$0xff]
    %v89 = vld [vmem:[#allocation5 + $0x88] sm:$0xff]
    %v90 = vld [vmem:[#allocation5 + $0x90] sm:$0xff]
    %v91 = vld [vmem:[#allocation5 + $0x98] sm:$0xff]
    %v92 = vld [vmem:[#allocation5 + $0xa0] sm:$0xff]
    %v93 = vld [vmem:[#allocation5 + $0xa8] sm:$0xff]
    %v94 = vld [vmem:[#allocation5 + $0xb0] sm:$0xff]
    %v95 = vld [vmem:[#allocation5 + $0xb8] sm:$0xff]
    %v96 = vld [vmem:[#allocation5 + $0xc0] sm:$0xff]
    %v97 = vld [vmem:[#allocation5 + $0xc8] sm:$0xff]
    %v98 = vld [vmem:[#allocation5 + $0xd0] sm:$0xff]
    %v99 = vld [vmem:[#allocation5 + $0xd8] sm:$0xff]
    %v100 = vld [vmem:[#allocation5 + $0xe0] sm:$0xff]
    %v101 = vld [vmem:[#allocation5 + $0xe8] sm:$0xff]
    %v102 = vld [vmem:[#allocation5 + $0xf0] sm:$0xff]
    %v103 = vld [vmem:[#allocation5 + $0xf8] sm:$0xff]
    %v104 = vld [vmem:[%s2] sm:$0x1]
    %v106 = vperm.slane %v104, 0
    %108 = vmatpush.msra.mxu0 %v87
    %109 = vmatpush.msra.mxu0 %v86
    %110 = vmatpush.msra.mxu0 %v85
    %111 = vmatpush.msra.mxu0 %v84
    %112 = vmatpush.msra.mxu0 %v83
    %113 = vmatpush.msra.mxu0 %v82
    %114 = vmatpush.msra.mxu0 %v81
    %115 = vmatpush.msra.mxu0 %v80
    %116 = vmatpush.msra.mxu0 %v79
    %117 = vmatpush.msra.mxu0 %v78
    %118 = vmatpush.msra.mxu0 %v77
    %119 = vmatpush.msra.mxu0 %v76
    %120 = vmatpush.msra.mxu0 %v75
    %121 = vmatpush.msra.mxu0 %v74
    %122 = vmatpush.msra.mxu0 %v73
    %123 = vmatpush.msra.mxu0 %v72
    %124 = vmatmul.f32.gmra.mxu0 %v68
    %v125 = vpop.f32.mrf.mxu0
    %v126 = vadd.f32 %v106, %v125
    %127 = vmatmul.f32.gmra.mxu0 %v70
    %v128 = vpop.f32.mrf.mxu0
    %v129 = vadd.f32 %v106, %v128
    %130 = vdwg.mxu0
    %131 = vmatpush.msra.mxu0 %v103
    %132 = vmatpush.msra.mxu0 %v102
    %133 = vmatpush.msra.mxu0 %v101
    %134 = vmatpush.msra.mxu0 %v100
    %135 = vmatpush.msra.mxu0 %v99
    %136 = vmatpush.msra.mxu0 %v98
    %137 = vmatpush.msra.mxu0 %v97
    %138 = vmatpush.msra.mxu0 %v96
    %139 = vmatpush.msra.mxu0 %v95
    %140 = vmatpush.msra.mxu0 %v94
    %141 = vmatpush.msra.mxu0 %v93
    %142 = vmatpush.msra.mxu0 %v92
    %143 = vmatpush.msra.mxu0 %v91
    %144 = vmatpush.msra.mxu0 %v90
    %145 = vmatpush.msra.mxu0 %v89
    %146 = vmatpush.msra.mxu0 %v88
    %147 = vmatmul.f32.gmra.mxu0 %v69
    %v148 = vpop.f32.mrf.mxu0
    %v149 = vadd.f32 %v126, %v148
    %150 = vmatmul.f32.gmra.mxu0 %v71
    %v151 = vpop.f32.mrf.mxu0
    %v152 = vadd.f32 %v129, %v151
    %153 = vdwg.mxu0
    %v154 = vsub.f32 0.0, %v149
    %v155 = vsub.f32 0.0, %v152
    %v156 = vmul.f32 %v154, 1.442695
    %v157 = vpow.pop %v156
    %v158 = vmul.f32 %v155, 1.442695
    %v159 = vpow.pop %v158
    %v160 = vadd.f32 %v157, 1.0
    %v161 = vadd.f32 %v159, 1.0
    %v162 = vrcp.pop %v160
    %v163 = vrcp.pop %v161
    %v164 = vmul.f32 %v149, %v162
    %v165 = vmul.f32 %v152, %v163
    %v166 = vld [vmem:[#allocation7] sm:$0xff]
    %v167 = vld [vmem:[#allocation7 + $0x8] sm:$0xff]
    %v168 = vld [vmem:[#allocation7 + $0x10] sm:$0xff]
    %v169 = vld [vmem:[#allocation7 + $0x18] sm:$0xff]
    %v170 = vld [vmem:[#allocation7 + $0x20] sm:$0xff]
    %v171 = vld [vmem:[#allocation7 + $0x28] sm:$0xff]
    %v172 = vld [vmem:[#allocation7 + $0x30] sm:$0xff]
    %v173 = vld [vmem:[#allocation7 + $0x38] sm:$0xff]
    %v174 = vld [vmem:[#allocation7 + $0x40] sm:$0xff]
    %v175 = vld [vmem:[#allocation7 + $0x48] sm:$0xff]
    %v176 = vld [vmem:[#allocation7 + $0x50] sm:$0xff]
    %v177 = vld [vmem:[#allocation7 + $0x58] sm:$0xff]
    %v178 = vld [vmem:[#allocation7 + $0x60] sm:$0xff]
    %v179 = vld [vmem:[#allocation7 + $0x68] sm:$0xff]
    %v180 = vld [vmem:[#allocation7 + $0x70] sm:$0xff]
    %v181 = vld [vmem:[#allocation7 + $0x78] sm:$0xff]
    %v182 = vld [vmem:[%s4] sm:$0x1]
    %v184 = vperm.slane %v182, 0
    %186 = vmatpush.msra.mxu0 %v181
    %187 = vmatpush.msra.mxu0 %v180
    %188 = vmatpush.msra.mxu0 %v179
    %189 = vmatpush.msra.mxu0 %v178
    %190 = vmatpush.msra.mxu0 %v177
    %191 = vmatpush.msra.mxu0 %v176
    %192 = vmatpush.msra.mxu0 %v175
    %193 = vmatpush.msra.mxu0 %v174
    %194 = vmatpush.msra.mxu0 %v173
    %195 = vmatpush.msra.mxu0 %v172
    %196 = vmatpush.msra.mxu0 %v171
    %197 = vmatpush.msra.mxu0 %v170
    %198 = vmatpush.msra.mxu0 %v169
    %199 = vmatpush.msra.mxu0 %v168
    %200 = vmatpush.msra.mxu0 %v167
    %201 = vmatpush.msra.mxu0 %v166
    %202 = vmatmul.f32.gmra.mxu0 %v164
    %v203 = vpop.f32.mrf.mxu0
    %v204 = vadd.f32 %v184, %v203
    %205 = vmatmul.f32.gmra.mxu0 %v165
    %v206 = vpop.f32.mrf.mxu0
    %v207 = vadd.f32 %v184, %v206
    %208 = vdwg.mxu0
    %209 = vst [vmem:[#allocation8] sm:$0xff] %v204
    %210 = vst [vmem:[#allocation8 + $0x8] sm:$0xff] %v207
    // Predicated region
    $region34: #{tpu_custom_call.1} parent=1 // pred_check
      _
    $region35: #{tpu_custom_call.1} parent=1 // pred_check_branch
      %212 = sbr.rel (0) target = $region37
    $region36: #{tpu_custom_call.1} parent=1 // pred_region
      %214 = vsyncadd [#allocation4], 0
      %s215 = sshll.u32 [#allocation8], 4
      %s216 = int_to_ptr.vmem [resolvable:$true] %s215
      %s217 = sshll.u32 %s5, 4
      %s218 = int_to_ptr.hbm [resolvable:$true] %s217
      %223 = dma.vmem_to_hbm [thread:$0]  %s216, 256, %s218, [#allocation4], 128, 128, 8
    $region37: #{tpu_custom_call.1} parent=1 // pred_fallthru
      _
    // Predicated region
    $region38: #{tpu_custom_call.1} parent=1 // pred_check
      _
    $region39: #{tpu_custom_call.1} parent=1 // pred_check_branch
      %225 = sbr.rel (0) target = $region41
    $region40: #{tpu_custom_call.1} parent=1 // pred_region
      %227 = dma.done [#allocation4], 256
    $region41: #{tpu_custom_call.1} parent=1 // pred_fallthru
      _
    %228 = vsyncpa [#allocation3], 1
    %229 = vsyncpa [#allocation6], 1
    %230 = vsyncpa [#allocation4], 1

</llo_original>
